<compile_context>
chip_gen: v7x
topology: tpu7x:2x2x1
jax: 0.10.0
libtpu: 0.0.40
codegen_flags: <defaults>
</compile_context>

<pallas_src>
import functools

import jax
import jax.numpy as jnp
from jax import lax
from jax.experimental import pallas as pl
from jax.experimental.pallas import tpu as pltpu


def _round_up(x, m):
    return ((x + m - 1) // m) * m


def _vmem_estimate(C, Rp, K, TN):
    """Rough per-call VMEM working-set estimate in bytes."""
    lanes_k = _round_up(K, 128)
    img_blk = C * Rp * lanes_k * 2 * 2               # bf16 image, double-buffered
    map_blk = 8 * TN * 4 * 2                          # (1,2,TN) f32 block
    out_blk = _round_up(C, 8) * TN * 4 * 2            # (1,C,TN) block
    tmp = C * Rp * TN * 4                              # stage-A result, f32
    wk = _round_up(K, 8) * TN * 6                      # f32 + bf16 copy
    wr = Rp * TN * 4
    acc = C * 8 * TN * 4                               # stage-B accumulators
    return img_blk + map_blk + out_blk + tmp + wk + wr + acc


def _pick_tile_n(n_out, tile_n, B, C, Rp, K, budget=28 << 20):
    """Choose the lane-dense output tile size."""
    n_al = _round_up(n_out, 128)
    tn = _round_up(max(128, min(int(tile_n), n_al)), 128)
    # v7x has 2 TensorCores: with a single batch keep >= 2 parallel programs
    # along the tile axis (harmless no-op for v5e / v6e).
    if B == 1 and n_al >= 256:
        tn = min(tn, max(128, (n_al // 2) // 128 * 128))
    # Shrink until the VMEM working set fits the per-call budget.
    while tn > 128 and _vmem_estimate(C, Rp, K, tn) > budget:
        tn -= 128
    # If Ho*Wo is already lane aligned, prefer a tile that divides it exactly:
    # skips the phi pad and the output slice copies in the wrapper.
    if n_out % 128 == 0:
        while tn > 128 and n_out % tn != 0:
            tn -= 128
    return tn


def _stn2d_kernel(map_ref, img_ref, out_ref, *,
                  C, Rp, R, K, r_ch, k_ch,
                  r_scale, r_off, k_scale, k_off, clamp_border):
    """One (batch, output-tile) grid step.

    map_ref : (1, 2, TN)   raw map values for this output tile
    img_ref : (1, C*Rp, K) bf16 image (R rows zero-padded to Rp)
    out_ref : (1, C, TN)   warped image tile

    R : stage-B (VPU reduce) image axis, un-padded size
    K : stage-A (MXU contraction) image axis
    r_ch / k_ch : which map channel carries the R / K coordinate
    *_scale/_off : fused scale_map + grid_sample(align_corners=True)
                   un-normalization -> fractional pixel index.
    """
    # ---- coordinate math (float32) ------------------------------------
    pr = map_ref[0, r_ch:r_ch + 1, :].astype(jnp.float32) * r_scale + r_off
    pk = map_ref[0, k_ch:k_ch + 1, :].astype(jnp.float32) * k_scale + k_off
    if clamp_border:                                   # padding_mode='border'
        pr = jnp.clip(pr, 0.0, R - 1.0)
        pk = jnp.clip(pk, 0.0, K - 1.0)
    # padding_mode='zeros' needs nothing explicit: out-of-range corners get
    # zero tent weight or land on a zero-padded row -> contribute 0.

    # ---- separable bilinear weights as tent functions -------------------
    k_idx = lax.broadcasted_iota(jnp.int32, (K, 1), 0).astype(jnp.float32)
    r_idx = lax.broadcasted_iota(jnp.int32, (Rp, 1), 0).astype(jnp.float32)
    wk = jnp.maximum(0.0, 1.0 - jnp.abs(k_idx - pk))           # (K,  TN)
    wr = jnp.maximum(0.0, 1.0 - jnp.abs(r_idx - pr))           # (Rp, TN)

    # ---- stage A (MXU): contract the bf16 image over K ------------------
    tmp = jnp.dot(img_ref[0], wk.astype(jnp.bfloat16),
                  preferred_element_type=jnp.float32)           # (C*Rp, TN)

    # ---- stage B (VPU): weight by wr, reduce over Rp --------------------
    if (Rp // 8) * C <= 256:
        # Row-block-outer / channel-inner: each 8-sublane block of wr is
        # loaded once and reused for all C channels (stage B is vld-bound);
        # products accumulate in (8, TN) vregs and are reduced once.
        acc = [None] * C
        for r0 in range(0, Rp, 8):
            wblk = wr[r0:r0 + 8, :]
            for c in range(C):
                prod = tmp[c * Rp + r0:c * Rp + r0 + 8, :] * wblk
                acc[c] = prod if acc[c] is None else acc[c] + prod
        rows = [jnp.sum(a, axis=0, keepdims=True) for a in acc]
    else:
        # Very tall images: bound the unrolled code size; wr is re-read per
        # channel on this path only.
        rows = [jnp.sum(tmp[c * Rp:(c + 1) * Rp, :] * wr, axis=0, keepdims=True)
                for c in range(C)]
    out_ref[0] = jnp.concatenate(rows, axis=0).astype(out_ref.dtype)   # (C, TN)


def stn_nd_bcxyz_forward(input1, input2, spacing, zero_boundary=False,
                         using_bilinear=True, using_01_input=True,
                         tile_n=1024):
    """Pallas forward matching STNFunction_ND_BCXYZ (2D bilinear path)."""
    ndim = len(spacing)
    assert ndim + 2 == input2.ndim
    if not using_bilinear:
        # TODO(synk): nearest-neighbour sampling mode not implemented in-kernel.
        raise NotImplementedError("nearest mode not implemented")
    if ndim != 2:
        # TODO(synk): 1D/3D forward_stn paths not implemented; 2D is the hot path.
        raise NotImplementedError("only ndim == 2 implemented")

    B, C, H, W = map(int, input1.shape)
    Bm, two, Ho, Wo = map(int, input2.shape)
    assert Bm == B and two == 2
    out_dtype = input1.dtype

    # Contract over the larger spatial axis: better MXU fill and a lane-dense
    # image block (avoids padding a tiny W up to 128 lanes).
    swap = H > W
    if swap:
        img = jnp.swapaxes(input1, 2, 3)               # (B, C, W, H)
        R, K = W, H
        r_ch, k_ch = 1, 0
        r_dims = (Wo, W, float(spacing[1]))
        k_dims = (Ho, H, float(spacing[0]))
    else:
        img = input1
        R, K = H, W
        r_ch, k_ch = 0, 1
        r_dims = (Ho, H, float(spacing[0]))
        k_dims = (Wo, W, float(spacing[1]))

    def affine(map_sz, img_sz, sp):
        # Fused map_scale_utils.scale_map + grid_sample (align_corners=True)
        # un-normalization: pixel = raw * scale + off.
        if using_01_input and map_sz > 1:
            return (img_sz - 1.0) / ((map_sz - 1.0) * sp), 0.0
        return 0.5 * (img_sz - 1.0), 0.5 * (img_sz - 1.0)

    r_scale, r_off = affine(*r_dims)
    k_scale, k_off = affine(*k_dims)

    # Sublane-align the stage-B axis; padded rows are zero, so they carry only
    # zero ('border') or semantically-correct zero ('zeros') contributions.
    Rp = _round_up(R, 8)
    if Rp != R:
        img = jnp.pad(img, ((0, 0), (0, 0), (0, Rp - R), (0, 0)))
    img = img.reshape(B, C * Rp, K)
    if img.dtype != jnp.bfloat16:
        img = img.astype(jnp.bfloat16)        # MXU operand; halves DMA + VMEM

    n_out = Ho * Wo
    TN = _pick_tile_n(n_out, tile_n, B, C, Rp, K)
    n_pad = _round_up(n_out, TN)

    phi = input2.reshape(B, 2, n_out)
    if n_pad != n_out:
        phi = jnp.pad(phi, ((0, 0), (0, 0), (0, n_pad - n_out)))

    kernel = functools.partial(
        _stn2d_kernel, C=C, Rp=Rp, R=R, K=K, r_ch=r_ch, k_ch=k_ch,
        r_scale=float(r_scale), r_off=float(r_off),
        k_scale=float(k_scale), k_off=float(k_off),
        clamp_border=(not zero_boundary))

    est = _vmem_estimate(C, Rp, K, TN)
    vmem_limit = int(min(max(2 * est, 32 << 20), 48 << 20))

    # TODO(synk): for very large images add per-tile source-row banding via
    # PrefetchScalarGridSpec / manual DMA, and pipeline_mode=pl.Buffered(1) on
    # the image spec for v7x's 64 MiB VMEM; not needed at these sizes.
    out = pl.pallas_call(
        kernel,
        out_shape=jax.ShapeDtypeStruct((B, C, n_pad), out_dtype),
        grid_spec=pltpu.PrefetchScalarGridSpec(
            num_scalar_prefetch=0,
            grid=(B, n_pad // TN),
            in_specs=[
                pl.BlockSpec((1, 2, TN), lambda b, j: (b, 0, j)),
                pl.BlockSpec((1, C * Rp, K), lambda b, j: (b, 0, 0)),
            ],
            out_specs=pl.BlockSpec((1, C, TN), lambda b, j: (b, 0, j)),
        ),
        compiler_params=pltpu.CompilerParams(
            dimension_semantics=("parallel", "parallel"),
            vmem_limit_bytes=vmem_limit),
    )(phi, img)

    if n_pad != n_out:
        out = out[:, :, :n_out]
    return out.reshape(B, C, Ho, Wo)


def _ref_forward(input1, input2, spacing, zero_boundary=False, using_01_input=True):
    """Pure-JAX reference of the same semantics (gather-based, float32)."""
    B, C, H, W = input1.shape
    _, _, Ho, Wo = input2.shape
    mx = input2[:, 0].astype(jnp.float32)
    my = input2[:, 1].astype(jnp.float32)
    if using_01_input:
        if Ho > 1:
            mx = mx * (2.0 / ((Ho - 1.0) * spacing[0])) - 1.0
        if Wo > 1:
            my = my * (2.0 / ((Wo - 1.0) * spacing[1])) - 1.0
    px = (mx + 1.0) * 0.5 * (H - 1.0)
    py = (my + 1.0) * 0.5 * (W - 1.0)
    if not zero_boundary:
        px = jnp.clip(px, 0.0, H - 1.0)
        py = jnp.clip(py, 0.0, W - 1.0)
    x0 = jnp.floor(px)
    y0 = jnp.floor(py)
    wx = px - x0
    wy = py - y0
    img_flat = input1.reshape(B, C, H * W).astype(jnp.float32)

    def corner(xi, yi, w):
        valid = (xi >= 0) & (xi <= H - 1) & (yi >= 0) & (yi <= W - 1)
        xc = jnp.clip(xi, 0, H - 1).astype(jnp.int32)
        yc = jnp.clip(yi, 0, W - 1).astype(jnp.int32)
        idx = (xc * W + yc).reshape(B, 1, Ho * Wo)
        v = jnp.take_along_axis(
            img_flat, jnp.broadcast_to(idx, (B, C, Ho * Wo)), axis=2)
        v = jnp.where(valid.reshape(B, 1, Ho * Wo), v, 0.0)
        return v * w.reshape(B, 1, Ho * Wo)

    out = (corner(x0, y0, (1.0 - wx) * (1.0 - wy))
           + corner(x0, y0 + 1.0, (1.0 - wx) * wy)
           + corner(x0 + 1.0, y0, wx * (1.0 - wy))
           + corner(x0 + 1.0, y0 + 1.0, wx * wy))
    return out.reshape(B, C, Ho, Wo).astype(input1.dtype)


if __name__ == "__main__":
    key = jax.random.PRNGKey(0)

    def make_case(case_key, B, C, H, W):
        k_img, k_phi = jax.random.split(case_key)
        spacing = (1.0 / (H - 1.0), 1.0 / (W - 1.0))
        img = jax.random.normal(k_img, (B, C, H, W), dtype=jnp.float32)
        # Identity deformation in physical coordinates + a few-pixel
        # perturbation (exercises interior sampling + boundary handling).
        xs = jnp.arange(H, dtype=jnp.float32) * spacing[0]
        ys = jnp.arange(W, dtype=jnp.float32) * spacing[1]
        id_map = jnp.stack(jnp.meshgrid(xs, ys, indexing="ij"), axis=0)
        phi = (id_map[None]
               + 2.5 * spacing[0]
               * jax.random.normal(k_phi, (B, 2, H, W), dtype=jnp.float32))
        return img, phi, spacing

    cases = [
        (2, 4, 16, 16),   # square image, lane-aligned n_out, no padding
        (1, 3, 20, 16),   # H > W -> contraction-axis swap; n_out pad; B == 1
        (1, 2, 12, 16),   # H % 8 != 0 -> row padding; n_out pad
    ]
    keys = jax.random.split(key, len(cases))

    # Tolerance accommodates the bf16 MXU operands (coordinate math stays f32);
    # worst-case bilinear error is ~|img| * 2^-7, well under 5e-2 here.
    for case_key, (B, C, H, W) in zip(keys, cases):
        img, phi, spacing = make_case(case_key, B, C, H, W)
        for zb in (False, True):
            out = stn_nd_bcxyz_forward(img, phi, spacing,
                                       zero_boundary=zb,
                                       using_bilinear=True,
                                       using_01_input=True)
            out = jax.block_until_ready(out)
            ref = _ref_forward(img, phi, spacing, zero_boundary=zb)
            assert out.shape == (B, C, H, W)
            err = float(jnp.max(jnp.abs(out - ref)))
            assert jnp.allclose(out, ref, atol=5e-2, rtol=5e-2), (
                f"case {(B, C, H, W)} zero_boundary={zb}: max abs err {err}")

    print("KERNEL_OK")
</pallas_src>

<mosaic_0001>
module attributes {stable_mosaic.version = 11 : i64} {
  func.func @_stn2d_kernel(%arg0: i32, %arg1: i32, %arg2: memref<1x2x256xf32, #tpu.memory_space<vmem>>, %arg3: memref<1x64x16xbf16, #tpu.memory_space<vmem>>, %arg4: memref<1x4x256xf32, #tpu.memory_space<vmem>>) attributes {dimension_semantics = [#tpu.dimension_semantics<parallel>, #tpu.dimension_semantics<parallel>], iteration_bounds = array<i64: 2, 1>, scalar_prefetch = 0 : i64, scratch_operands = 0 : i64, tpu.core_type = #tpu.core_type<tc>, window_params = [{transform_indices = @transform_0, window_bounds = array<i64: 1, 2, 256>}, {transform_indices = @transform_1, window_bounds = array<i64: 1, 64, 16>}, {transform_indices = @transform_2, window_bounds = array<i64: 1, 4, 256>}]} {
    %c0 = arith.constant 0 : index
    %c0_0 = arith.constant 0 : index
    %c0_1 = arith.constant 0 : index
    %0 = vector.load %arg2[%c0, %c0_0, %c0_1] : memref<1x2x256xf32, #tpu.memory_space<vmem>>, vector<1x1x256xf32>
    %1 = vector.shape_cast %0 : vector<1x1x256xf32> to vector<1x256xf32>
    %cst = arith.constant 1.500000e+01 : f32
    %2 = vector.broadcast %cst : f32 to vector<1x256xf32>
    %3 = arith.mulf %1, %2 : vector<1x256xf32>
    %cst_2 = arith.constant 0.000000e+00 : f32
    %4 = vector.broadcast %cst_2 : f32 to vector<1x256xf32>
    %5 = arith.addf %3, %4 : vector<1x256xf32>
    %c0_3 = arith.constant 0 : index
    %c1 = arith.constant 1 : index
    %c0_4 = arith.constant 0 : index
    %6 = vector.load %arg2[%c0_3, %c1, %c0_4] : memref<1x2x256xf32, #tpu.memory_space<vmem>>, vector<1x1x256xf32>
    %7 = vector.shape_cast %6 : vector<1x1x256xf32> to vector<1x256xf32>
    %cst_5 = arith.constant 1.500000e+01 : f32
    %8 = vector.broadcast %cst_5 : f32 to vector<1x256xf32>
    %9 = arith.mulf %7, %8 : vector<1x256xf32>
    %cst_6 = arith.constant 0.000000e+00 : f32
    %10 = vector.broadcast %cst_6 : f32 to vector<1x256xf32>
    %11 = arith.addf %9, %10 : vector<1x256xf32>
    %cst_7 = arith.constant 0.000000e+00 : f32
    %cst_8 = arith.constant 1.500000e+01 : f32
    %12 = vector.broadcast %cst_7 : f32 to vector<1x256xf32>
    %13 = arith.maximumf %12, %5 : vector<1x256xf32>
    %14 = vector.broadcast %cst_8 : f32 to vector<1x256xf32>
    %15 = arith.minimumf %14, %13 : vector<1x256xf32>
    %cst_9 = arith.constant 0.000000e+00 : f32
    %cst_10 = arith.constant 1.500000e+01 : f32
    %16 = vector.broadcast %cst_9 : f32 to vector<1x256xf32>
    %17 = arith.maximumf %16, %11 : vector<1x256xf32>
    %18 = vector.broadcast %cst_10 : f32 to vector<1x256xf32>
    %19 = arith.minimumf %18, %17 : vector<1x256xf32>
    %20 = tpu.iota {dimensions = array<i32: 0>} : vector<16x1xi32>
    %21 = arith.sitofp %20 : vector<16x1xi32> to vector<16x1xf32>
    %22 = tpu.iota {dimensions = array<i32: 0>} : vector<16x1xi32>
    %23 = arith.sitofp %22 : vector<16x1xi32> to vector<16x1xf32>
    %24 = vector.broadcast %21 : vector<16x1xf32> to vector<16x256xf32>
    %25 = vector.broadcast %19 : vector<1x256xf32> to vector<16x256xf32>
    %26 = arith.subf %24, %25 : vector<16x256xf32>
    %27 = math.absf %26 : vector<16x256xf32>
    %cst_11 = arith.constant 1.000000e+00 : f32
    %28 = vector.broadcast %cst_11 : f32 to vector<16x256xf32>
    %29 = arith.subf %28, %27 : vector<16x256xf32>
    %cst_12 = arith.constant 0.000000e+00 : f32
    %30 = vector.broadcast %cst_12 : f32 to vector<16x256xf32>
    %31 = arith.maximumf %30, %29 : vector<16x256xf32>
    %32 = vector.broadcast %23 : vector<16x1xf32> to vector<16x256xf32>
    %33 = vector.broadcast %15 : vector<1x256xf32> to vector<16x256xf32>
    %34 = arith.subf %32, %33 : vector<16x256xf32>
    %35 = math.absf %34 : vector<16x256xf32>
    %cst_13 = arith.constant 1.000000e+00 : f32
    %36 = vector.broadcast %cst_13 : f32 to vector<16x256xf32>
    %37 = arith.subf %36, %35 : vector<16x256xf32>
    %cst_14 = arith.constant 0.000000e+00 : f32
    %38 = vector.broadcast %cst_14 : f32 to vector<16x256xf32>
    %39 = arith.maximumf %38, %37 : vector<16x256xf32>
    %c0_15 = arith.constant 0 : index
    %c0_16 = arith.constant 0 : index
    %c0_17 = arith.constant 0 : index
    %40 = vector.load %arg3[%c0_15, %c0_16, %c0_17] : memref<1x64x16xbf16, #tpu.memory_space<vmem>>, vector<1x64x16xbf16>
    %41 = vector.shape_cast %40 : vector<1x64x16xbf16> to vector<64x16xbf16>
    %42 = arith.truncf %31 : vector<16x256xf32> to vector<16x256xbf16>
    %cst_18 = arith.constant dense<0.000000e+00> : vector<64x256xf32>
    %43 = tpu.matmul %41, %42, %cst_18 {dimension_numbers = #tpu.dot_dimension_numbers<[1], [0], [0], [1], [0, 0, 1, 1], [], []>} : vector<64x16xbf16>, vector<16x256xbf16>, vector<64x256xf32> -> vector<64x256xf32>
    %44 = vector.extract_strided_slice %39 {offsets = [0, 0], sizes = [8, 256], strides = [1, 1]} : vector<16x256xf32> to vector<8x256xf32>
    %45 = vector.extract_strided_slice %43 {offsets = [0, 0], sizes = [8, 256], strides = [1, 1]} : vector<64x256xf32> to vector<8x256xf32>
    %46 = arith.mulf %45, %44 : vector<8x256xf32>
    %47 = vector.extract_strided_slice %43 {offsets = [16, 0], sizes = [8, 256], strides = [1, 1]} : vector<64x256xf32> to vector<8x256xf32>
    %48 = arith.mulf %47, %44 : vector<8x256xf32>
    %49 = vector.extract_strided_slice %43 {offsets = [32, 0], sizes = [8, 256], strides = [1, 1]} : vector<64x256xf32> to vector<8x256xf32>
    %50 = arith.mulf %49, %44 : vector<8x256xf32>
    %51 = vector.extract_strided_slice %43 {offsets = [48, 0], sizes = [8, 256], strides = [1, 1]} : vector<64x256xf32> to vector<8x256xf32>
    %52 = arith.mulf %51, %44 : vector<8x256xf32>
    %53 = vector.extract_strided_slice %39 {offsets = [8, 0], sizes = [8, 256], strides = [1, 1]} : vector<16x256xf32> to vector<8x256xf32>
    %54 = vector.extract_strided_slice %43 {offsets = [8, 0], sizes = [8, 256], strides = [1, 1]} : vector<64x256xf32> to vector<8x256xf32>
    %55 = arith.mulf %54, %53 : vector<8x256xf32>
    %56 = arith.addf %46, %55 : vector<8x256xf32>
    %57 = vector.extract_strided_slice %43 {offsets = [24, 0], sizes = [8, 256], strides = [1, 1]} : vector<64x256xf32> to vector<8x256xf32>
    %58 = arith.mulf %57, %53 : vector<8x256xf32>
    %59 = arith.addf %48, %58 : vector<8x256xf32>
    %60 = vector.extract_strided_slice %43 {offsets = [40, 0], sizes = [8, 256], strides = [1, 1]} : vector<64x256xf32> to vector<8x256xf32>
    %61 = arith.mulf %60, %53 : vector<8x256xf32>
    %62 = arith.addf %50, %61 : vector<8x256xf32>
    %63 = vector.extract_strided_slice %43 {offsets = [56, 0], sizes = [8, 256], strides = [1, 1]} : vector<64x256xf32> to vector<8x256xf32>
    %64 = arith.mulf %63, %53 : vector<8x256xf32>
    %65 = arith.addf %52, %64 : vector<8x256xf32>
    %cst_19 = arith.constant dense<0.000000e+00> : vector<256xf32>
    %66 = vector.multi_reduction <add>, %56, %cst_19 [0] : vector<8x256xf32> to vector<256xf32>
    %67 = vector.shape_cast %66 : vector<256xf32> to vector<1x256xf32>
    %cst_20 = arith.constant dense<0.000000e+00> : vector<256xf32>
    %68 = vector.multi_reduction <add>, %59, %cst_20 [0] : vector<8x256xf32> to vector<256xf32>
    %69 = vector.shape_cast %68 : vector<256xf32> to vector<1x256xf32>
    %cst_21 = arith.constant dense<0.000000e+00> : vector<256xf32>
    %70 = vector.multi_reduction <add>, %62, %cst_21 [0] : vector<8x256xf32> to vector<256xf32>
    %71 = vector.shape_cast %70 : vector<256xf32> to vector<1x256xf32>
    %cst_22 = arith.constant dense<0.000000e+00> : vector<256xf32>
    %72 = vector.multi_reduction <add>, %65, %cst_22 [0] : vector<8x256xf32> to vector<256xf32>
    %73 = vector.shape_cast %72 : vector<256xf32> to vector<1x256xf32>
    %74 = tpu.concatenate %67, %69, %71, %73 in 0 : vector<1x256xf32>, vector<1x256xf32>, vector<1x256xf32>, vector<1x256xf32> -> vector<4x256xf32>
    %c0_23 = arith.constant 0 : index
    %c0_24 = arith.constant 0 : index
    %c0_25 = arith.constant 0 : index
    %75 = vector.load %arg4[%c0_23, %c0_24, %c0_25] : memref<1x4x256xf32, #tpu.memory_space<vmem>>, vector<1x4x256xf32>
    %76 = vector.shape_cast %75 : vector<1x4x256xf32> to vector<4x256xf32>
    %77 = vector.shape_cast %74 : vector<4x256xf32> to vector<1x4x256xf32>
    tpu.vector_store %arg4[%c0_23, %c0_24, %c0_25], %77 {strides = array<i32>} : memref<1x4x256xf32, #tpu.memory_space<vmem>>, vector<1x4x256xf32>,
    return
  }
  func.func @transform_0(%arg0: i32, %arg1: i32) -> (i32, i32, i32) {
    %c0_i32 = arith.constant 0 : i32
    %c0_i32_0 = arith.constant 0 : i32
    return %arg0, %c0_i32, %arg1 : i32, i32, i32
  }
  func.func @transform_1(%arg0: i32, %arg1: i32) -> (i32, i32, i32) {
    %c0_i32 = arith.constant 0 : i32
    %c0_i32_0 = arith.constant 0 : i32
    %c0_i32_1 = arith.constant 0 : i32
    return %arg0, %c0_i32, %c0_i32_0 : i32, i32, i32
  }
  func.func @transform_2(%arg0: i32, %arg1: i32) -> (i32, i32, i32) {
    %c0_i32 = arith.constant 0 : i32
    %c0_i32_0 = arith.constant 0 : i32
    return %arg0, %c0_i32, %arg1 : i32, i32, i32
  }
}

</mosaic_0001>

<llo_original>
// kernel: tpu_custom_call.1
$region0: #{tpu_custom_call.1}
  #allocation0 [shape = 'u32[]', space=smem, size = 0x4, offset = 0x4, fixed_abs, tag = 'smem constant byte address 0x4 - core index']
  #allocation1 [shape = 'u32[144,128]{1,0:T(1,128)}', space=vmem, size = 0x12000, scoped, tag = 'internal scratch']
  %s0 = inlined_call_operand.vmem [shape: f32[2,2,256], index: 0, kind: input, shape index: {}]
  %s1 = inlined_call_operand.vmem [shape: bf16[2,64,16], index: 1, kind: input, shape index: {}]
  %s2 = inlined_call_operand.hbm [shape: f32[2,4,256], index: 2, kind: output, shape index: {}]
  %s3 = sld [smem:[#allocation0]]
  $region41: #{tpu_custom_call.1} parent=0
    _
  %s5 = ssub.s32 1, %s3
  %s6 = scalar_select 0, %s5, %s3
  $region1: #{tpu_custom_call.1} parent=0
    #allocation2 [shape = 'u8[8192]{0}', space=vmem, size = 0x2000, scoped, tag = 'output window, operand 0']
    #allocation3 [shape = 's32[2]{0}', space=sflag, size = 0x8, scoped, tag = 'scoped memory for tpu_custom_call.1']
    %7 = vsyncpa [#allocation3], 0
    %s8 = scalar_lea.sflag [#allocation3], 1
    %9 = vsyncpa %s8, 0
    loop: start=0, step=1, limit=4
    $region2: #{tpu_custom_call.1} parent=1 // loop_pre_header
      _
    $region3: #{tpu_custom_call.1} parent=1 // loop_header
      %s11 = sphi 0, %s15
      %p12 = scmp.ge.s32.totalorder %s11, 4
      %s18 = sphi 0, %s30
      %s19 = sphi 0, %s26
      %s20 = sphi 0, %s18
      %s21 = sphi 0, %s19
      %s22 = sphi 0, %s20
      %s23 = sphi 0, %s21
      %s35 = sphi 0, %s37
      %s38 = sphi 0, %s35
      %s39 = sphi 0, %s38
      %s55 = sphi 0, %s39
      %s61 = sphi 0, %s63
      %s64 = sphi 0, %s61
      %s65 = sphi 0, %s64
      %s81 = sphi 0, %s65
      %s89 = sphi 0, %s91
      %s92 = sphi 0, %s89
      %s93 = sphi 0, %s92
      %s109 = sphi 0, %s93
    $region4: #{tpu_custom_call.1} parent=1 // loop_header_branch
      %14 = sbr.rel (%p12) target = $region8
    $region5: #{tpu_custom_call.1} parent=1 // loop_body
      %s16 = ssub.s32 %s11, 1
      %s17 = ssub.s32 %s11, 2
      %s24 = sadd.s32 1, %s19
      %p25 = scmp.ge.s32.totalorder %s24, 1
      %s26 = scalar_select %p25, 0, %s24
      %s27 = sadd.s32 1, %s18
      %s28 = scalar_select %p25, %s27, %s18
      %p29 = scmp.ge.s32.totalorder %s28, 2
      %s30 = scalar_select %p29, 0, %s28
      %s31 = ssub.s32 %s18, %s30
      %s32 = ssub.s32 %s19, %s26
      %s33 = sor.u32 %s31, %s32
      %p34 = scmp.eq.s32.totalorder %s33, 0
      %s36 = sadd.s32 %s35, 1
      %s37 = scalar_select %p34, %s35, %s36
      %p40 = pneg %p34
      %p41 = scmp.eq.s32.totalorder %s11, 1
      %p42 = por %p40, %p41
      %p43 = scmp.ne.s32.totalorder %s35, %s38
      %p44 = scmp.eq.s32.totalorder %s11, 0
      %p45 = por %p43, %p44
      %p46 = scmp.ne.s32.totalorder %s35, %s38
      %p47 = scmp.eq.s32.totalorder %s16, 1
      %p48 = por %p46, %p47
      %p49 = scmp.ne.s32.totalorder %s38, %s39
      %p50 = scmp.eq.s32.totalorder %s16, 0
      %p51 = por %p49, %p50
      %p52 = scmp.ne.s32.totalorder %s38, %s39
      %p53 = scmp.eq.s32.totalorder %s17, 1
      %p54 = por %p52, %p53
      %p56 = scmp.ne.s32.totalorder %s39, %s55
      %p57 = scmp.eq.s32.totalorder %s17, 0
      %p58 = por %p56, %p57
      %s59 = ssub.s32 %s18, %s30
      %p60 = scmp.eq.s32.totalorder %s59, 0
      %s62 = sadd.s32 %s61, 1
      %s63 = scalar_select %p60, %s61, %s62
      %p66 = pneg %p60
      %p67 = scmp.eq.s32.totalorder %s11, 1
      %p68 = por %p66, %p67
      %p69 = scmp.ne.s32.totalorder %s61, %s64
      %p70 = scmp.eq.s32.totalorder %s11, 0
      %p71 = por %p69, %p70
      %p72 = scmp.ne.s32.totalorder %s61, %s64
      %p73 = scmp.eq.s32.totalorder %s16, 1
      %p74 = por %p72, %p73
      %p75 = scmp.ne.s32.totalorder %s64, %s65
      %p76 = scmp.eq.s32.totalorder %s16, 0
      %p77 = por %p75, %p76
      %p78 = scmp.ne.s32.totalorder %s64, %s65
      %p79 = scmp.eq.s32.totalorder %s17, 1
      %p80 = por %p78, %p79
      %p82 = scmp.ne.s32.totalorder %s65, %s81
      %p83 = scmp.eq.s32.totalorder %s17, 0
      %p84 = por %p82, %p83
      %s85 = ssub.s32 %s18, %s30
      %s86 = ssub.s32 %s19, %s26
      %s87 = sor.u32 %s85, %s86
      %p88 = scmp.eq.s32.totalorder %s87, 0
      %s90 = sadd.s32 %s89, 1
      %s91 = scalar_select %p88, %s89, %s90
      %p94 = pneg %p88
      %p95 = scmp.eq.s32.totalorder %s11, 1
      %p96 = por %p94, %p95
      %p97 = scmp.ne.s32.totalorder %s89, %s92
      %p98 = scmp.eq.s32.totalorder %s11, 0
      %p99 = por %p97, %p98
      %p100 = scmp.ne.s32.totalorder %s89, %s92
      %p101 = scmp.eq.s32.totalorder %s16, 1
      %p102 = por %p100, %p101
      %p103 = scmp.ne.s32.totalorder %s92, %s93
      %p104 = scmp.eq.s32.totalorder %s16, 0
      %p105 = por %p103, %p104
      %p106 = scmp.ne.s32.totalorder %s92, %s93
      %p107 = scmp.eq.s32.totalorder %s17, 1
      %p108 = por %p106, %p107
      %p110 = scmp.ne.s32.totalorder %s93, %s109
      %p111 = scmp.eq.s32.totalorder %s17, 0
      %p112 = por %p110, %p111
      %p113 = scmp.le.s32.totalorder 1, %s11
      %p114 = scmp.lt.s32.totalorder %s11, 3
      %p115 = pnand %p113, %p114
      %p116 = pneg %p115
      // Predicated region
      $region9: #{tpu_custom_call.1} parent=5 // pred_check
        _
      $region10: #{tpu_custom_call.1} parent=5 // pred_check_branch
        %118 = sbr.rel (%p115) target = $region12
      $region11: #{tpu_custom_call.1} parent=5 // pred_region
        %s119 = ssub.s32 %s11, 1
      $region12: #{tpu_custom_call.1} parent=5 // pred_fallthru
        _
      %p120 = scmp.lt.s32.totalorder %s11, 2
      // Predicated region
      $region13: #{tpu_custom_call.1} parent=5 // pred_check
        %p121 = pneg %p120
      $region14: #{tpu_custom_call.1} parent=5 // pred_check_branch
        %123 = sbr.rel (%p121) target = $region16
      $region15: #{tpu_custom_call.1} parent=5 // pred_region
        // Predicated region
        $region17: #{tpu_custom_call.1} parent=15 // pred_check
          %p124 = pneg %p45
        $region18: #{tpu_custom_call.1} parent=15 // pred_check_branch
          %126 = sbr.rel (%p124) target = $region20
        $region19: #{tpu_custom_call.1} parent=15 // pred_region
          %s127 = smul.u32 2, %s19
          %p128 = scmp.lt.s32.totalorder %s18, 1
          %s129 = scalar_select %p128, %s18, 1
          %p130 = scmp.lt.s32.totalorder %s127, 1
          %s131 = scalar_select %p130, %s127, 1
          %s132 = smul.addr %s129, 2
          %s133 = sadd.s32 %s131, %s132
          %s134 = smul.addr %s133, 2
          %s135 = scalar_lea.vmem %s0, %s134
          %s136 = smul.u32 2, %s19
        $region20: #{tpu_custom_call.1} parent=15 // pred_fallthru
          _
        // Predicated region
        $region21: #{tpu_custom_call.1} parent=15 // pred_check
          %p137 = pneg %p71
        $region22: #{tpu_custom_call.1} parent=15 // pred_check_branch
          %139 = sbr.rel (%p137) target = $region24
        $region23: #{tpu_custom_call.1} parent=15 // pred_region
          %p140 = scmp.lt.s32.totalorder %s18, 1
          %s141 = scalar_select %p140, %s18, 1
          %s142 = smul.addr %s141, 8
          %s143 = smul.addr %s142, 4
          %s144 = scalar_lea.vmem %s1, %s143
        $region24: #{tpu_custom_call.1} parent=15 // pred_fallthru
          _
      $region16: #{tpu_custom_call.1} parent=5 // pred_fallthru
        _
      %p145 = scmp.le.s32.totalorder 1, %s11
      %p146 = scmp.lt.s32.totalorder %s11, 3
      %p147 = pnand %p145, %p146
      %p148 = pneg %p147
      // Predicated region
      $region25: #{tpu_custom_call.1} parent=5 // pred_check
        _
      $region26: #{tpu_custom_call.1} parent=5 // pred_check_branch
        %150 = sbr.rel (%p147) target = $region28
      $region27: #{tpu_custom_call.1} parent=5 // pred_region
        %s151 = ssub.s32 %s11, 1
        %s152 = smul.u32 2, %s21
        %p153 = scmp.lt.s32.totalorder %s20, 1
        %s154 = scalar_select %p153, %s20, 1
        %p155 = scmp.lt.s32.totalorder %s152, 1
        %s156 = scalar_select %p155, %s152, 1
        %s157 = smul.addr %s154, 2
        %s158 = sadd.s32 %s156, %s157
        %s159 = smul.addr %s158, 2
        %s160 = scalar_lea.vmem %s0, %s159
        %p161 = pneg %p51
        %p162 = pneg %p48
        %p163 = scmp.lt.s32.totalorder %s20, 1
        %s164 = scalar_select %p163, %s20, 1
        %s165 = smul.addr %s164, 8
        %s166 = smul.addr %s165, 4
        %s167 = scalar_lea.vmem %s1, %s166
        %p168 = pneg %p77
        %p169 = pneg %p74
        %p170 = pneg %p105
        %p171 = pneg %p102
        %s172 = sand.u32 %s92, 1
        %s173 = scalar_lea.sflag [#allocation3], %s172
        %s174 = sand.u32 %s92, 1
        %s175 = smul.addr %s174, 8
        %s176 = scalar_lea.vmem [#allocation2], %s175
        %s177 = smul.u32 2, %s21
        %p178 = scmp.lt.s32.totalorder %s20, 1
        %s179 = scalar_select %p178, %s20, 1
        %p180 = scmp.lt.s32.totalorder %s177, 1
        %s181 = scalar_select %p180, %s177, 1
        %s182 = smul.addr %s179, 2
        %s183 = sadd.s32 %s181, %s182
        %s184 = smul.addr %s183, 2
        %s185 = scalar_lea.vmem %s0, %s184
        %s186 = smul.u32 2, %s21
        %p187 = scmp.lt.s32.totalorder %s20, 1
        %s188 = scalar_select %p187, %s20, 1
        %s189 = smul.addr %s188, 8
        %s190 = smul.addr %s189, 4
        %s191 = scalar_lea.vmem %s1, %s190
        %s192 = smul.u32 2, %s21
        %v194 = vld [vmem:[%s185] ss:$2 sm:$0x3]
        %v195 = vmul.f32 %v194, 15.0
        %v196 = vadd.f32 %v195, 0.0
        %s197 = scalar_lea.vmem %s185, 1
        %v198 = vld [vmem:[%s197] ss:$2 sm:$0x3]
        %v199 = vmul.f32 %v198, 15.0
        %v200 = vadd.f32 %v199, 0.0
        %v201 = vmax.f32 %v196, 0.0
        %v202 = vmin.f32 %v201, 15.0
        %v203 = vmax.f32 %v200, 0.0
        %v204 = vmin.f32 %v203, 15.0
        %v205 = vlaneseq
        %v206 = vshrl.u32 %v205, 7
        %v207 = vadd.s32 %v206, 8
        %v208 = vcvt.s32.f32 %v206
        %v209 = vcvt.s32.f32 %v207
        %v211 = vlaneseq
        %v212 = vshrl.u32 %v211, 7
        %v213 = vsub.s32 0, %v212
        %v214 = vrot.slane %v204, %v213
        %v215 = vlaneseq
        %v216 = vshrl.u32 %v215, 7
        %v217 = vsub.s32 1, %v216
        %v218 = vrot.slane %v204, %v217
        %v221 = vsub.f32 %v208, %v214
        %v222 = vsub.f32 %v208, %v218
        %v223 = vsub.f32 %v209, %v214
        %v224 = vsub.f32 %v209, %v218
        %v225 = vand.u32 2147483647, %v221
        %v226 = vand.u32 2147483647, %v222
        %v227 = vand.u32 2147483647, %v223
        %v228 = vand.u32 2147483647, %v224
        %v229 = vsub.f32 1.0, %v225
        %v230 = vsub.f32 1.0, %v226
        %v231 = vsub.f32 1.0, %v227
        %v232 = vsub.f32 1.0, %v228
        %v233 = vmax.f32 %v229, 0.0
        %v234 = vmax.f32 %v230, 0.0
        %v235 = vmax.f32 %v231, 0.0
        %v236 = vmax.f32 %v232, 0.0
        %v238 = vlaneseq
        %v239 = vshrl.u32 %v238, 7
        %v240 = vsub.s32 0, %v239
        %v241 = vrot.slane %v202, %v240
        %v242 = vlaneseq
        %v243 = vshrl.u32 %v242, 7
        %v244 = vsub.s32 1, %v243
        %v245 = vrot.slane %v202, %v244
        %v248 = vsub.f32 %v208, %v241
        %v249 = vsub.f32 %v208, %v245
        %v250 = vsub.f32 %v209, %v241
        %v251 = vsub.f32 %v209, %v245
        %v252 = vand.u32 2147483647, %v248
        %v253 = vand.u32 2147483647, %v249
        %v254 = vand.u32 2147483647, %v250
        %v255 = vand.u32 2147483647, %v251
        %v256 = vsub.f32 1.0, %v252
        %v257 = vsub.f32 1.0, %v253
        %v258 = vsub.f32 1.0, %v254
        %v259 = vsub.f32 1.0, %v255
        %v260 = vmax.f32 %v256, 0.0
        %v261 = vmax.f32 %v257, 0.0
        %v262 = vmax.f32 %v258, 0.0
        %v263 = vmax.f32 %v259, 0.0
        %v264 = vld [vmem:[%s191] sm:$0xf]
        %v265 = vld [vmem:[%s191 + $0x4] sm:$0xf]
        %v266 = vld [vmem:[%s191 + $0x8] sm:$0xf]
        %v267 = vld [vmem:[%s191 + $0xc] sm:$0xf]
        %v268 = vld [vmem:[%s191 + $0x10] sm:$0xf]
        %v269 = vld [vmem:[%s191 + $0x14] sm:$0xf]
        %v270 = vld [vmem:[%s191 + $0x18] sm:$0xf]
        %v271 = vld [vmem:[%s191 + $0x1c] sm:$0xf]
        %v272 = vpack.c.bf16 %v235, %v233
        %v273 = vpack.c.bf16 %v236, %v234
        %v282 = vunpack.c.l.b16 %v264
        %v283 = vunpack.c.l.b16 %v265
        %v284 = vunpack.c.l.b16 %v266
        %v285 = vunpack.c.l.b16 %v267
        %v286 = vunpack.c.l.b16 %v268
        %v287 = vunpack.c.l.b16 %v269
        %v288 = vunpack.c.l.b16 %v270
        %v289 = vunpack.c.l.b16 %v271
        %v290 = vpack.c.b16 %v283, %v282
        %v291 = vpack.c.b16 %v285, %v284
        %v292 = vpack.c.b16 %v287, %v286
        %v293 = vpack.c.b16 %v289, %v288
        %vm294 = vcmask 130048
        %v296 = vsel %vm294, %v290, 0
        %v299 = vsel %vm294, %v291, 0
        %v302 = vsel %vm294, %v292, 0
        %v305 = vsel %vm294, %v293, 0
        %307 = vmatprep.subr.bf16.mxu0 %v273
        %308 = vmatpush1.bf16.msra.mxu0 %v272
        %309 = vmatprep.subr.bf16.mxu0 0
        %310 = vmatpush1.bf16.msra.mxu0 0
        %311 = vmatprep.subr.bf16.mxu0 0
        %312 = vmatpush1.bf16.msra.mxu0 0
        %313 = vmatprep.subr.bf16.mxu0 0
        %314 = vmatpush1.bf16.msra.mxu0 0
        %315 = vmatprep.subr.bf16.mxu0 0
        %316 = vmatpush1.bf16.msra.mxu0 0
        %317 = vmatprep.subr.bf16.mxu0 0
        %318 = vmatpush1.bf16.msra.mxu0 0
        %319 = vmatprep.subr.bf16.mxu0 0
        %320 = vmatpush1.bf16.msra.mxu0 0
        %321 = vmatprep.subr.bf16.mxu0 0
        %322 = vmatpush1.bf16.msra.mxu0 0
        %323 = vmatprep.subr.bf16.mxu0 0
        %324 = vmatpush1.bf16.msra.mxu0 0
        %325 = vmatprep.subr.bf16.mxu0 0
        %326 = vmatpush1.bf16.msra.mxu0 0
        %327 = vmatprep.subr.bf16.mxu0 0
        %328 = vmatpush1.bf16.msra.mxu0 0
        %329 = vmatprep.subr.bf16.mxu0 0
        %330 = vmatpush1.bf16.msra.mxu0 0
        %331 = vmatprep.subr.bf16.mxu0 0
        %332 = vmatpush1.bf16.msra.mxu0 0
        %333 = vmatprep.subr.bf16.mxu0 0
        %334 = vmatpush1.bf16.msra.mxu0 0
        %335 = vmatprep.subr.bf16.mxu0 0
        %336 = vmatpush1.bf16.msra.mxu0 0
        %337 = vmatprep.subr.bf16.mxu0 0
        %338 = vmatpush1.bf16.msra.mxu0 0
        %339 = vmatprep.mubr.bf16.mxu0 0
        %340 = vmatmul.mubr.bf16.gmra.mrb[0].mxu0 %v296
        %v341 = vpop.f32.mrb[0].mxu0
        %v342 = vadd.f32 0.0, %v341
        %v343 = vpop.f32.mrb[0].mxu0
        %v344 = vadd.f32 0.0, %v343
        %v345 = vpop.f32.mrb[0].mxu0
        %v346 = vadd.f32 0.0, %v345
        %v347 = vpop.f32.mrb[0].mxu0
        %v348 = vadd.f32 0.0, %v347
        %349 = vmatprep.mubr.bf16.mxu0 0
        %350 = vmatmul.mubr.bf16.gmra.mrb[0].mxu0 %v299
        %v351 = vpop.f32.mrb[0].mxu0
        %v352 = vadd.f32 0.0, %v351
        %v353 = vpop.f32.mrb[0].mxu0
        %v354 = vadd.f32 0.0, %v353
        %v355 = vpop.f32.mrb[0].mxu0
        %v356 = vadd.f32 0.0, %v355
        %v357 = vpop.f32.mrb[0].mxu0
        %v358 = vadd.f32 0.0, %v357
        %359 = vmatprep.mubr.bf16.mxu0 0
        %360 = vmatmul.mubr.bf16.gmra.mrb[0].mxu0 %v302
        %v361 = vpop.f32.mrb[0].mxu0
        %v362 = vadd.f32 0.0, %v361
        %v363 = vpop.f32.mrb[0].mxu0
        %v364 = vadd.f32 0.0, %v363
        %v365 = vpop.f32.mrb[0].mxu0
        %v366 = vadd.f32 0.0, %v365
        %v367 = vpop.f32.mrb[0].mxu0
        %v368 = vadd.f32 0.0, %v367
        %369 = vmatprep.mubr.bf16.mxu0 0
        %370 = vmatmul.mubr.bf16.gmra.mrb[0].mxu0 %v305
        %v371 = vpop.f32.mrb[0].mxu0
        %v372 = vadd.f32 0.0, %v371
        %v373 = vpop.f32.mrb[0].mxu0
        %v374 = vadd.f32 0.0, %v373
        %v375 = vpop.f32.mrb[0].mxu0
        %v376 = vadd.f32 0.0, %v375
        %v377 = vpop.f32.mrb[0].mxu0
        %v378 = vadd.f32 0.0, %v377
        %379 = vdwg.mxu0
        %v380 = vmul.f32 %v342, %v260
        %v381 = vmul.f32 %v344, %v261
        %v382 = vmul.f32 %v352, %v260
        %v383 = vmul.f32 %v354, %v261
        %v384 = vmul.f32 %v362, %v260
        %v385 = vmul.f32 %v364, %v261
        %v386 = vmul.f32 %v372, %v260
        %v387 = vmul.f32 %v374, %v261
        %v388 = vmul.f32 %v346, %v262
        %v389 = vmul.f32 %v348, %v263
        %v390 = vadd.f32 %v380, %v388
        %v391 = vadd.f32 %v381, %v389
        %v392 = vmul.f32 %v356, %v262
        %v393 = vmul.f32 %v358, %v263
        %v394 = vadd.f32 %v382, %v392
        %v395 = vadd.f32 %v383, %v393
        %v396 = vmul.f32 %v366, %v262
        %v397 = vmul.f32 %v368, %v263
        %v398 = vadd.f32 %v384, %v396
        %v399 = vadd.f32 %v385, %v397
        %v400 = vmul.f32 %v376, %v262
        %v401 = vmul.f32 %v378, %v263
        %v402 = vadd.f32 %v386, %v400
        %v403 = vadd.f32 %v387, %v401
        %v404 = vrot.slane %v390, 4
        %v405 = vadd.f32 %v390, %v404
        %v406 = vrot.slane %v405, 2
        %v407 = vadd.f32 %v405, %v406
        %v408 = vrot.slane %v407, 1
        %v409 = vadd.f32 %v407, %v408
        %v410 = vrot.slane %v391, 4
        %v411 = vadd.f32 %v391, %v410
        %v412 = vrot.slane %v411, 2
        %v413 = vadd.f32 %v411, %v412
        %v414 = vrot.slane %v413, 1
        %v415 = vadd.f32 %v413, %v414
        %v416 = vrot.slane %v394, 4
        %v417 = vadd.f32 %v394, %v416
        %v418 = vrot.slane %v417, 2
        %v419 = vadd.f32 %v417, %v418
        %v420 = vrot.slane %v419, 1
        %v421 = vadd.f32 %v419, %v420
        %v422 = vrot.slane %v395, 4
        %v423 = vadd.f32 %v395, %v422
        %v424 = vrot.slane %v423, 2
        %v425 = vadd.f32 %v423, %v424
        %v426 = vrot.slane %v425, 1
        %v427 = vadd.f32 %v425, %v426
        %v428 = vrot.slane %v398, 4
        %v429 = vadd.f32 %v398, %v428
        %v430 = vrot.slane %v429, 2
        %v431 = vadd.f32 %v429, %v430
        %v432 = vrot.slane %v431, 1
        %v433 = vadd.f32 %v431, %v432
        %v434 = vrot.slane %v399, 4
        %v435 = vadd.f32 %v399, %v434
        %v436 = vrot.slane %v435, 2
        %v437 = vadd.f32 %v435, %v436
        %v438 = vrot.slane %v437, 1
        %v439 = vadd.f32 %v437, %v438
        %v440 = vrot.slane %v402, 4
        %v441 = vadd.f32 %v402, %v440
        %v442 = vrot.slane %v441, 2
        %v443 = vadd.f32 %v441, %v442
        %v444 = vrot.slane %v443, 1
        %v445 = vadd.f32 %v443, %v444
        %v446 = vrot.slane %v403, 4
        %v447 = vadd.f32 %v403, %v446
        %v448 = vrot.slane %v447, 2
        %v449 = vadd.f32 %v447, %v448
        %v450 = vrot.slane %v449, 1
        %v451 = vadd.f32 %v449, %v450
        %vm452 = vcmask 1040384
        %v453 = vsel %vm452, %v409, %v421
        %v454 = vsel %vm452, %v415, %v427
        %vm455 = vcmask 1041408
        %v456 = vsel %vm455, %v453, %v433
        %v457 = vsel %vm455, %v454, %v439
        %vm458 = vcmask 1042432
        %v459 = vsel %vm458, %v456, %v445
        %v460 = vsel %vm458, %v457, %v451
        %v463 = vcombine.low %v459, %v460
        %465 = vst [vmem:[%s176] sm:$0xff] %v463
        %s466 = sand.u32 %s92, 1
        %s467 = scalar_lea.sflag [#allocation3], %s466
        %s468 = sand.u32 %s92, 1
        %s469 = smul.addr %s468, 8
        %s470 = scalar_lea.vmem [#allocation2], %s469
        // Predicated region
        $region29: #{tpu_custom_call.1} parent=27 // pred_check
          %p471 = pneg %p102
        $region30: #{tpu_custom_call.1} parent=27 // pred_check_branch
          %473 = sbr.rel (%p471) target = $region32
        $region31: #{tpu_custom_call.1} parent=27 // pred_region
          %s474 = smul.u32 2, %s21
          %s476 = ssub.s32 128, 128
          %477 = vsyncadd %s467, %s476
          %s478 = smul.addr %s20, 2
          %s479 = sadd.s32 %s474, %s478
          %s480 = smul.addr %s479, 64
          %s481 = scalar_lea.hbm %s2, %s480
          %s483 = sshll.u32 %s470, 4
          %s484 = int_to_ptr.vmem [resolvable:$true] %s483
          %486 = dma.vmem_to_hbm [thread:$0]  %s484, 128, %s481, %s467
        $region32: #{tpu_custom_call.1} parent=27 // pred_fallthru
          _
      $region28: #{tpu_custom_call.1} parent=5 // pred_fallthru
        _
      %p487 = scmp.le.s32.totalorder 2, %s11
      // Predicated region
      $region33: #{tpu_custom_call.1} parent=5 // pred_check
        %p488 = pneg %p487
      $region34: #{tpu_custom_call.1} parent=5 // pred_check_branch
        %490 = sbr.rel (%p488) target = $region36
      $region35: #{tpu_custom_call.1} parent=5 // pred_region
        %s491 = ssub.s32 %s11, 2
        // Predicated region
        $region37: #{tpu_custom_call.1} parent=35 // pred_check
          %p492 = pneg %p108
        $region38: #{tpu_custom_call.1} parent=35 // pred_check_branch
          %494 = sbr.rel (%p492) target = $region40
        $region39: #{tpu_custom_call.1} parent=35 // pred_region
          %s495 = sand.u32 %s93, 1
          %s496 = scalar_lea.sflag [#allocation3], %s495
          %s497 = sand.u32 %s93, 1
          %s498 = smul.addr %s497, 8
          %s499 = scalar_lea.vmem [#allocation2], %s498
          %500 = dma.done %s496, 128
        $region40: #{tpu_custom_call.1} parent=35 // pred_fallthru
          _
      $region36: #{tpu_custom_call.1} parent=5 // pred_fallthru
        _
    $region6: #{tpu_custom_call.1} parent=1 // loop_footer
      %s15 = sadd.s32 1, %s11
    $region7: #{tpu_custom_call.1} parent=1 // loop_footer_branch
      %10 = sbr.rel target = $region3
    $region8: #{tpu_custom_call.1} parent=1 // loop_exit
      _
    %501 = vsyncpa [#allocation3], 1
    %s502 = scalar_lea.sflag [#allocation3], 1
    %503 = vsyncpa %s502, 1

</llo_original>
